<compile_context>
chip_gen: v7x
topology: tpu7x:2x2x1
jax: 0.10.0
libtpu: 0.0.40
codegen_flags: <defaults>
</compile_context>

<pallas_src>
import functools
import math

import jax
import jax.numpy as jnp
from jax import lax
from jax.experimental import pallas as pl
from jax.experimental.pallas import tpu as pltpu


def _round_up(x, m):
    return ((x + m - 1) // m) * m


# ----------------------------------------------------------------------------
# Per-generation tiling configuration
# ----------------------------------------------------------------------------
def _tpu_core_config():
    """Returns (tensorcores_per_chip, vmem_limit_bytes, tile_vmem_budget)."""
    try:
        kind = jax.devices()[0].device_kind.lower()
    except Exception:
        kind = ""
    if "v7" in kind:
        # 2 TCs, 64 MiB VMEM per TC: keep the per-TC tile budget modest.
        return 2, 48 * 1024 * 1024, 28 * 1024 * 1024
    # v5e / v6e: 1 TC, 128 MiB physical VMEM -> raise the scoped limit so a
    # single big ROI tile fits and w6 streams from HBM exactly once.
    return 1, 96 * 1024 * 1024, 64 * 1024 * 1024


def _select_tiles(n, d_in, rep_p, n_cores, vmem_budget, tk_max=1024):
    """Pick (tm, tk) for the fused MLP kernel."""
    # --- K tile: prefer a divisor of d_in so the hot loop has no ragged mask.
    if d_in <= tk_max:
        tk = d_in
    else:
        tk = 0
        t = (tk_max // 128) * 128
        while t >= 128:
            if d_in % t == 0:
                tk = t
                break
            t -= 128
        if tk == 0:
            tk = (tk_max // 128) * 128   # ragged last K tile, masked in-kernel

    # --- M tile: one ROI tile per TensorCore so the (large) fc6 weight is
    # streamed from HBM once per core; shrink to the VMEM budget if needed.
    tm = _round_up(pl.cdiv(max(n, 1), n_cores), 128)

    def vmem_est(tm_, tk_):
        return (2 * tm_ * tk_ * 2          # x tile   (bf16, double-buffered)
                + 2 * tk_ * rep_p * 2      # w6 slice (bf16, double-buffered)
                + 2 * rep_p * rep_p * 2    # w7       (bf16, assume 2 bufs)
                + 2 * tm_ * rep_p * 4      # out tile (f32,  double-buffered)
                + 4 * rep_p * 4)           # biases

    while tm > 128 and vmem_est(tm, tk) > vmem_budget:
        tm -= 128
    return tm, tk


# ----------------------------------------------------------------------------
# Pallas kernel: fused, tiled 2-layer MLP head
#   out = relu(relu(x @ W6 + b6) @ W7 + b7)
# ----------------------------------------------------------------------------
def _mlp_head_kernel(x_ref, w6_ref, b6_ref, w7_ref, b7_ref, o_ref,
                     *, k_steps, k_rem):
    k = pl.program_id(1)

    @pl.when(k == 0)
    def _():
        o_ref[...] = jnp.zeros_like(o_ref)

    def partial_dot(mask_last):
        x = x_ref[...]
        w6 = w6_ref[...]
        if mask_last:
            # Ragged last K tile: zero both operands' out-of-range K region so
            # stale NaN/Inf in the padded block can never reach the output.
            col = lax.broadcasted_iota(jnp.int32, x.shape, 1)
            row = lax.broadcasted_iota(jnp.int32, w6.shape, 0)
            x = jnp.where(col < k_rem, x, jnp.zeros_like(x))
            w6 = jnp.where(row < k_rem, w6, jnp.zeros_like(w6))
        # fc6 partial product; bf16 MXU, f32 accumulation into the resident
        # output block (its index_map ignores k).
        o_ref[...] += jnp.dot(x, w6, preferred_element_type=jnp.float32)

    if k_rem:
        # Mask only on the last K step -- off the hot per-iteration path.
        @pl.when(k < k_steps - 1)
        def _():
            partial_dot(False)

        @pl.when(k == k_steps - 1)
        def _():
            partial_dot(True)
    else:
        partial_dot(False)

    @pl.when(k == k_steps - 1)
    def _():
        h = jnp.maximum(o_ref[...] + b6_ref[...], 0.0)            # relu(fc6)
        o = jnp.dot(h.astype(w7_ref.dtype), w7_ref[...],
                    preferred_element_type=jnp.float32) + b7_ref[...]
        o_ref[...] = jnp.maximum(o, 0.0)                          # relu(fc7)


def mlp_head(x, w6p, b6p, w7p, b7p, *, rep):
    """x: (N, D_in) bf16; w6p: (D_in, R_p) bf16 (rows pre-permuted, width
    pre-padded); b6p/b7p: (1, R_p) f32; w7p: (R_p, R_p) bf16."""
    n, d_in = x.shape
    rep_p = w6p.shape[1]

    n_cores, vmem_limit, tile_budget = _tpu_core_config()
    tm, tk = _select_tiles(n, d_in, rep_p, n_cores, tile_budget)
    m_steps = pl.cdiv(n, tm)
    k_steps = pl.cdiv(d_in, tk)
    k_rem = d_in % tk

    out = pl.pallas_call(
        functools.partial(_mlp_head_kernel, k_steps=k_steps, k_rem=k_rem),
        out_shape=jax.ShapeDtypeStruct((n, rep_p), jnp.float32),
        grid=(m_steps, k_steps),
        in_specs=[
            pl.BlockSpec((tm, tk), lambda i, k: (i, k)),        # x tile
            pl.BlockSpec((tk, rep_p), lambda i, k: (k, 0)),     # w6 K-slice
            pl.BlockSpec((1, rep_p), lambda i, k: (0, 0)),      # b6 (resident)
            pl.BlockSpec((rep_p, rep_p), lambda i, k: (0, 0)),  # w7 (resident)
            pl.BlockSpec((1, rep_p), lambda i, k: (0, 0)),      # b7 (resident)
        ],
        out_specs=pl.BlockSpec((tm, rep_p), lambda i, k: (i, 0)),
        compiler_params=pltpu.CompilerParams(
            # ROI tiles are independent -> megacore sharding on v7x;
            # K is the fc6 reduction -> innermost, "arbitrary".
            dimension_semantics=("parallel", "arbitrary"),
            vmem_limit_bytes=vmem_limit,
        ),
    )(x.astype(jnp.bfloat16), w6p, b6p, w7p, b7p)
    return out[:, :rep] if rep != rep_p else out


# ----------------------------------------------------------------------------
# One-time weight preparation (outside the jitted forward)
# ----------------------------------------------------------------------------
def prepare_mlp_params(w6, b6, w7, b7, in_channels, resolution):
    """Permute fc6 rows from (C,R,R)-flatten order to (R,R,C)-flatten order
    (so the pooler can skip the NHWC->NCHW activation transpose), pad the fc
    width to a lane-dense multiple of 128, cast weights to bf16 once."""
    rep = int(w6.shape[1])
    rep_p = _round_up(rep, 128)
    C, R = in_channels, resolution
    hh, ww, cc = jnp.meshgrid(jnp.arange(R), jnp.arange(R), jnp.arange(C),
                              indexing="ij")
    perm = (cc * R * R + hh * R + ww).reshape(-1)       # new row -> old row
    w6p = jnp.pad(w6[perm], ((0, 0), (0, rep_p - rep))).astype(jnp.bfloat16)
    w7p = jnp.pad(w7, ((0, rep_p - rep), (0, rep_p - rep))).astype(jnp.bfloat16)
    b6p = jnp.pad(b6.reshape(1, -1), ((0, 0), (0, rep_p - rep))).astype(jnp.float32)
    b7p = jnp.pad(b7.reshape(1, -1), ((0, 0), (0, rep_p - rep))).astype(jnp.float32)
    return w6p, b6p, w7p, b7p, rep


# ----------------------------------------------------------------------------
# Multi-level ROIAlign pooler (plain JAX glue), semantics of the
# maskrcnn_benchmark Pooler: single pass, per-ROI level assignment, gathers
# directly from a channel-last flattened stack of all FPN levels.
# Returns (N, R, R, C) bf16 (channel-last -- the fc6 rows are pre-permuted).
# ----------------------------------------------------------------------------
def _level_mapper(rois, k_min, k_max, canonical_scale=224, canonical_level=4,
                  eps=1e-6):
    w = rois[:, 3] - rois[:, 1]
    h = rois[:, 4] - rois[:, 2]
    s = jnp.sqrt(w * h)
    lvl = jnp.floor(canonical_level + jnp.log2(s / canonical_scale + eps))
    lvl = jnp.clip(lvl, k_min, k_max)
    return (lvl - k_min).astype(jnp.int32)


def roi_align_pooler(features, rois, scales, resolution, sampling_ratio):
    """features: list of (B, C, H_l, W_l); rois: (N, 5) = [b, x1, y1, x2, y2]."""
    num_levels = len(features)
    B, C = features[0].shape[:2]
    N = rois.shape[0]
    R = resolution
    sr = sampling_ratio
    P = R * sr

    Hs = [int(f.shape[2]) for f in features]
    Ws = [int(f.shape[3]) for f in features]

    # One channel-last flattened gather table for all levels.
    flat = [f.transpose(0, 2, 3, 1).reshape(-1, C) for f in features]
    row_counts = [B * h * w for h, w in zip(Hs, Ws)]
    level_offsets = [0]
    for c in row_counts[:-1]:
        level_offsets.append(level_offsets[-1] + c)
    feat_all = jnp.concatenate(flat, axis=0) if num_levels > 1 else flat[0]

    # Per-ROI FPN level assignment.
    if num_levels == 1:
        lvls = jnp.zeros((N,), jnp.int32)
    else:
        k_min = int(round(-math.log2(scales[0])))
        k_max = int(round(-math.log2(scales[-1])))
        lvls = _level_mapper(rois, k_min, k_max)

    scale_r = jnp.asarray(scales, jnp.float32)[lvls]
    h_r = jnp.asarray(Hs, jnp.int32)[lvls]
    w_r = jnp.asarray(Ws, jnp.int32)[lvls]
    off_r = jnp.asarray(level_offsets, jnp.int32)[lvls]

    b_idx = rois[:, 0].astype(jnp.int32)
    x1 = rois[:, 1] * scale_r
    y1 = rois[:, 2] * scale_r
    x2 = rois[:, 3] * scale_r
    y2 = rois[:, 4] * scale_r
    roi_w = jnp.maximum(x2 - x1, 1.0)
    roi_h = jnp.maximum(y2 - y1, 1.0)
    bin_w = roi_w / R
    bin_h = roi_h / R

    # sample offsets inside the ROI: off = r + (i + 0.5) / sr
    grid = jnp.arange(R, dtype=jnp.float32)
    sub = (jnp.arange(sr, dtype=jnp.float32) + 0.5) / sr
    off = (grid[:, None] + sub[None, :]).reshape(-1)              # (P,)
    ys = y1[:, None] + off[None, :] * bin_h[:, None]              # (N, P)
    xs = x1[:, None] + off[None, :] * bin_w[:, None]              # (N, P)

    def interp(coords, size):
        size_f = size.astype(jnp.float32)[:, None]
        size_i = size[:, None]
        valid = (coords >= -1.0) & (coords <= size_f)
        c = jnp.maximum(coords, 0.0)
        lo = jnp.floor(c).astype(jnp.int32)
        at_edge = lo >= size_i - 1
        lo = jnp.where(at_edge, size_i - 1, lo)
        hi = jnp.where(at_edge, size_i - 1, lo + 1)
        frac = jnp.where(at_edge, 0.0, c - lo.astype(jnp.float32))
        return lo, hi, frac, valid

    y_lo, y_hi, ly, y_valid = interp(ys, h_r)
    x_lo, x_hi, lx, x_valid = interp(xs, w_r)
    hy, hx = 1.0 - ly, 1.0 - lx

    base = off_r + b_idx * h_r * w_r                              # (N,)

    def lin(yi, xi):
        return (base[:, None, None]
                + yi[:, :, None] * w_r[:, None, None]
                + xi[:, None, :])                                 # (N, P, P)

    # Single stacked gather for all 4 bilinear corners.
    idx = jnp.stack([lin(y_lo, x_lo), lin(y_lo, x_hi),
                     lin(y_hi, x_lo), lin(y_hi, x_hi)], axis=1)   # (N,4,P,P)
    vals = jnp.take(feat_all, idx.reshape(-1), axis=0).reshape(N, 4, P, P, C)
    v00, v01, v10, v11 = vals[:, 0], vals[:, 1], vals[:, 2], vals[:, 3]

    val = (v00 * (hy[:, :, None] * hx[:, None, :])[..., None]
           + v01 * (hy[:, :, None] * lx[:, None, :])[..., None]
           + v10 * (ly[:, :, None] * hx[:, None, :])[..., None]
           + v11 * (ly[:, :, None] * lx[:, None, :])[..., None])
    mask = (y_valid[:, :, None] & x_valid[:, None, :])[..., None]
    val = jnp.where(mask, val, 0.0)

    # average the sr x sr samples per output bin -> (N, R, R, C), bf16 out
    # (channel-last is kept: fc6 rows are pre-permuted to match).
    val = val.reshape(N, R, sr, R, sr, C).mean(axis=(2, 4))
    return val.astype(jnp.bfloat16)


# ----------------------------------------------------------------------------
# Full forward:  pooler -> flatten -> fc6 -> relu -> fc7 -> relu
# ----------------------------------------------------------------------------
@functools.partial(jax.jit, static_argnums=(6, 7, 8, 9))
def fpn2mlp_forward(features, rois, w6p, b6p, w7p, b7p,
                    scales, resolution, sampling_ratio, rep):
    x = roi_align_pooler(features, rois, scales, resolution, sampling_ratio)
    x = x.reshape(x.shape[0], -1)                   # (N, R*R*C), bf16
    return mlp_head(x, w6p, b6p, w7p, b7p, rep=rep)


if __name__ == "__main__":
    key = jax.random.PRNGKey(0)
    k1, k2, k3, k4 = jax.random.split(key, 4)

    # Small synthetic config (cfg.MODEL.ROI_POSE_HEAD.*):
    B, C = 2, 4                      # batch, in_channels
    resolution = 4                   # POOLER_RESOLUTION
    scales = (0.25, 0.125)           # POOLER_SCALES (2 FPN levels)
    sampling_ratio = 2               # POOLER_SAMPLING_RATIO
    rep = 32                         # MLP_HEAD_DIM
    input_size = C * resolution * resolution

    # FPN features (NCHW); image is 64x64.
    feat0 = jax.random.normal(k1, (B, C, 16, 16), jnp.float32)   # scale 1/4
    feat1 = jax.random.normal(k2, (B, C, 8, 8), jnp.float32)     # scale 1/8

    # proposals: (N, 5) = [batch_idx, x1, y1, x2, y2] in image coordinates.
    rois = jnp.array([
        [0.0,  4.0,  4.0, 20.0, 24.0],
        [0.0, 10.0,  8.0, 50.0, 40.0],
        [0.0,  0.0,  0.0, 63.0, 63.0],
        [1.0,  5.0,  5.0, 30.0, 18.0],
        [1.0, 20.0, 16.0, 44.0, 60.0],
        [1.0,  2.0, 30.0, 34.0, 62.0],
    ], dtype=jnp.float32)

    # make_fc(use_gn=False): kaiming_uniform_(a=1) weights, zero bias.
    # Weights stored pre-transposed (in, out), in-dim in PyTorch (C,R,R) order.
    bound6 = (3.0 / input_size) ** 0.5
    w6 = jax.random.uniform(k3, (input_size, rep), jnp.float32, -bound6, bound6)
    b6 = jnp.zeros((1, rep), jnp.float32)
    bound7 = (3.0 / rep) ** 0.5
    w7 = jax.random.uniform(k4, (rep, rep), jnp.float32, -bound7, bound7)
    b7 = jnp.zeros((1, rep), jnp.float32)

    # One-time weight prep (cast/pad/permute) -- outside the jitted forward.
    w6p, b6p, w7p, b7p, rep_out = prepare_mlp_params(
        w6, b6, w7, b7, in_channels=C, resolution=resolution)

    out = fpn2mlp_forward([feat0, feat1], rois, w6p, b6p, w7p, b7p,
                          scales, resolution, sampling_ratio, rep_out)
    out = jax.block_until_ready(out)

    assert out.shape == (rois.shape[0], rep), out.shape
    assert bool(jnp.all(out >= 0.0))           # ReLU output
    assert bool(jnp.all(jnp.isfinite(out)))
    print("KERNEL_OK")
</pallas_src>

<mosaic_0001>
module attributes {stable_mosaic.version = 11 : i64} {
  func.func @_mlp_head_kernel(%arg0: i32, %arg1: i32, %arg2: memref<128x64xbf16, #tpu.memory_space<vmem>>, %arg3: memref<64x128xbf16, #tpu.memory_space<vmem>>, %arg4: memref<1x128xf32, #tpu.memory_space<vmem>>, %arg5: memref<128x128xbf16, #tpu.memory_space<vmem>>, %arg6: memref<1x128xf32, #tpu.memory_space<vmem>>, %arg7: memref<128x128xf32, #tpu.memory_space<vmem>>) attributes {dimension_semantics = [#tpu.dimension_semantics<parallel>, #tpu.dimension_semantics<arbitrary>], iteration_bounds = array<i64: 1, 1>, scalar_prefetch = 0 : i64, scratch_operands = 0 : i64, tpu.core_type = #tpu.core_type<tc>, window_params = [{transform_indices = @transform_0, window_bounds = array<i64: 128, 64>}, {transform_indices = @transform_1, window_bounds = array<i64: 64, 128>}, {pipeline_mode = #tpu.pipeline_mode<synchronous>, transform_indices = @transform_2, window_bounds = array<i64: 1, 128>}, {pipeline_mode = #tpu.pipeline_mode<synchronous>, transform_indices = @transform_3, window_bounds = array<i64: 128, 128>}, {pipeline_mode = #tpu.pipeline_mode<synchronous>, transform_indices = @transform_4, window_bounds = array<i64: 1, 128>}, {transform_indices = @transform_5, window_bounds = array<i64: 128, 128>}]} {
    %c0_i32 = arith.constant 0 : i32
    %0 = arith.cmpi eq, %arg1, %c0_i32 : i32
    %1 = arith.extui %0 : i1 to i32
    %c0_i32_0 = arith.constant 0 : i32
    %2 = arith.cmpi ne, %1, %c0_i32_0 : i32
    scf.if %2 {
      %cst_10 = arith.constant 0.000000e+00 : f32
      %12 = vector.broadcast %cst_10 : f32 to vector<128x128xf32>
      %c0_11 = arith.constant 0 : index
      %c0_12 = arith.constant 0 : index
      %13 = vector.load %arg7[%c0_11, %c0_12] : memref<128x128xf32, #tpu.memory_space<vmem>>, vector<128x128xf32>
      tpu.vector_store %arg7[%c0_11, %c0_12], %12 {strides = array<i32>} : memref<128x128xf32, #tpu.memory_space<vmem>>, vector<128x128xf32>,
    } else {
    }
    %c0 = arith.constant 0 : index
    %c0_1 = arith.constant 0 : index
    %3 = vector.load %arg2[%c0, %c0_1] : memref<128x64xbf16, #tpu.memory_space<vmem>>, vector<128x64xbf16>
    %c0_2 = arith.constant 0 : index
    %c0_3 = arith.constant 0 : index
    %4 = vector.load %arg3[%c0_2, %c0_3] : memref<64x128xbf16, #tpu.memory_space<vmem>>, vector<64x128xbf16>
    %c0_4 = arith.constant 0 : index
    %c0_5 = arith.constant 0 : index
    %5 = vector.load %arg7[%c0_4, %c0_5] : memref<128x128xf32, #tpu.memory_space<vmem>>, vector<128x128xf32>
    %cst = arith.constant dense<0.000000e+00> : vector<128x128xf32>
    %6 = tpu.matmul %3, %4, %cst {dimension_numbers = #tpu.dot_dimension_numbers<[1], [0], [0], [1], [0, 0, 1, 1], [], []>} : vector<128x64xbf16>, vector<64x128xbf16>, vector<128x128xf32> -> vector<128x128xf32>
    %7 = arith.addf %5, %6 : vector<128x128xf32>
    %c0_6 = arith.constant 0 : index
    %c0_7 = arith.constant 0 : index
    %8 = vector.load %arg7[%c0_6, %c0_7] : memref<128x128xf32, #tpu.memory_space<vmem>>, vector<128x128xf32>
    tpu.vector_store %arg7[%c0_6, %c0_7], %7 {strides = array<i32>} : memref<128x128xf32, #tpu.memory_space<vmem>>, vector<128x128xf32>,
    %c0_i32_8 = arith.constant 0 : i32
    %9 = arith.cmpi eq, %arg1, %c0_i32_8 : i32
    %10 = arith.extui %9 : i1 to i32
    %c0_i32_9 = arith.constant 0 : i32
    %11 = arith.cmpi ne, %10, %c0_i32_9 : i32
    scf.if %11 {
      %c0_10 = arith.constant 0 : index
      %c0_11 = arith.constant 0 : index
      %12 = vector.load %arg7[%c0_10, %c0_11] : memref<128x128xf32, #tpu.memory_space<vmem>>, vector<128x128xf32>
      %c0_12 = arith.constant 0 : index
      %c0_13 = arith.constant 0 : index
      %13 = vector.load %arg4[%c0_12, %c0_13] : memref<1x128xf32, #tpu.memory_space<vmem>>, vector<1x128xf32>
      %14 = vector.broadcast %13 : vector<1x128xf32> to vector<128x128xf32>
      %15 = arith.addf %12, %14 : vector<128x128xf32>
      %cst_14 = arith.constant 0.000000e+00 : f32
      %16 = vector.broadcast %cst_14 : f32 to vector<128x128xf32>
      %17 = arith.maximumf %15, %16 : vector<128x128xf32>
      %18 = arith.truncf %17 : vector<128x128xf32> to vector<128x128xbf16>
      %c0_15 = arith.constant 0 : index
      %c0_16 = arith.constant 0 : index
      %19 = vector.load %arg5[%c0_15, %c0_16] : memref<128x128xbf16, #tpu.memory_space<vmem>>, vector<128x128xbf16>
      %cst_17 = arith.constant dense<0.000000e+00> : vector<128x128xf32>
      %20 = tpu.matmul %18, %19, %cst_17 {dimension_numbers = #tpu.dot_dimension_numbers<[1], [0], [0], [1], [0, 0, 1, 1], [], []>} : vector<128x128xbf16>, vector<128x128xbf16>, vector<128x128xf32> -> vector<128x128xf32>
      %c0_18 = arith.constant 0 : index
      %c0_19 = arith.constant 0 : index
      %21 = vector.load %arg6[%c0_18, %c0_19] : memref<1x128xf32, #tpu.memory_space<vmem>>, vector<1x128xf32>
      %22 = vector.broadcast %21 : vector<1x128xf32> to vector<128x128xf32>
      %23 = arith.addf %20, %22 : vector<128x128xf32>
      %cst_20 = arith.constant 0.000000e+00 : f32
      %24 = vector.broadcast %cst_20 : f32 to vector<128x128xf32>
      %25 = arith.maximumf %23, %24 : vector<128x128xf32>
      %c0_21 = arith.constant 0 : index
      %c0_22 = arith.constant 0 : index
      %26 = vector.load %arg7[%c0_21, %c0_22] : memref<128x128xf32, #tpu.memory_space<vmem>>, vector<128x128xf32>
      tpu.vector_store %arg7[%c0_21, %c0_22], %25 {strides = array<i32>} : memref<128x128xf32, #tpu.memory_space<vmem>>, vector<128x128xf32>,
    } else {
    }
    return
  }
  func.func @transform_0(%arg0: i32, %arg1: i32) -> (i32, i32) {
    %c0_i32 = arith.constant 0 : i32
    return %arg0, %arg1 : i32, i32
  }
  func.func @transform_1(%arg0: i32, %arg1: i32) -> (i32, i32) {
    %c0_i32 = arith.constant 0 : i32
    %c0_i32_0 = arith.constant 0 : i32
    return %arg1, %c0_i32 : i32, i32
  }
  func.func @transform_2(%arg0: i32, %arg1: i32) -> (i32, i32) {
    %c0_i32 = arith.constant 0 : i32
    %c0_i32_0 = arith.constant 0 : i32
    %c0_i32_1 = arith.constant 0 : i32
    return %c0_i32, %c0_i32_0 : i32, i32
  }
  func.func @transform_3(%arg0: i32, %arg1: i32) -> (i32, i32) {
    %c0_i32 = arith.constant 0 : i32
    %c0_i32_0 = arith.constant 0 : i32
    %c0_i32_1 = arith.constant 0 : i32
    return %c0_i32, %c0_i32_0 : i32, i32
  }
  func.func @transform_4(%arg0: i32, %arg1: i32) -> (i32, i32) {
    %c0_i32 = arith.constant 0 : i32
    %c0_i32_0 = arith.constant 0 : i32
    %c0_i32_1 = arith.constant 0 : i32
    return %c0_i32, %c0_i32_0 : i32, i32
  }
  func.func @transform_5(%arg0: i32, %arg1: i32) -> (i32, i32) {
    %c0_i32 = arith.constant 0 : i32
    %c0_i32_0 = arith.constant 0 : i32
    return %arg0, %c0_i32 : i32, i32
  }
}

</mosaic_0001>

<llo_original>
// kernel: fpn2mlp_forward.1
$region0: #{fpn2mlp_forward.1}
  #allocation0 [shape = 'u32[]', space=smem, size = 0x4, offset = 0x4, fixed_abs, tag = 'smem constant byte address 0x4 - core index']
  #allocation1 [shape = 'u32[144,128]{1,0:T(1,128)}', space=vmem, size = 0x12000, scoped, tag = 'internal scratch']
  %s0 = inlined_call_operand.hbm [shape: bf16[6,64], index: 0, kind: input, shape index: {}]
  %s1 = inlined_call_operand.hbm [shape: bf16[64,128], index: 1, kind: input, shape index: {}]
  %s2 = inlined_call_operand.hbm [shape: f32[1,128], index: 2, kind: input, shape index: {}]
  %s3 = inlined_call_operand.hbm [shape: bf16[128,128], index: 3, kind: input, shape index: {}]
  %s4 = inlined_call_operand.hbm [shape: f32[1,128], index: 4, kind: input, shape index: {}]
  %s5 = inlined_call_operand.hbm [shape: f32[6,128], index: 5, kind: output, shape index: {}]
  %s6 = sld [smem:[#allocation0]]
  $region58: #{fpn2mlp_forward.1} parent=0
    _
  %s8 = ssub.s32 1, %s6
  %s9 = scalar_select 0, %s8, %s6
  $region1: #{fpn2mlp_forward.1} parent=0
    #allocation2 [shape = 'u8[32768]{0}', space=vmem, size = 0x8000, scoped, tag = 'input window, operand 0, single buffered']
    #allocation3 [shape = 's32[1]{0}', space=sflag, size = 0x4, scoped, tag = 'scoped memory for fpn2mlp_forward.1']
    #allocation4 [shape = 's32[1]{0}', space=sflag, size = 0x4, scoped, tag = 'scoped memory for fpn2mlp_forward.1']
    #allocation5 [shape = 'u8[16384]{0}', space=vmem, size = 0x4000, scoped, tag = 'input window, operand 1, single buffered']
    #allocation6 [shape = 's32[1]{0}', space=sflag, size = 0x4, scoped, tag = 'scoped memory for fpn2mlp_forward.1']
    #allocation7 [shape = 'u8[512]{0}', space=vmem, size = 0x400, scoped, tag = 'input window, operand 2, single buffered']
    #allocation8 [shape = 'u8[32768]{0}', space=vmem, size = 0x8000, scoped, tag = 'input window, operand 3, single buffered']
    #allocation9 [shape = 's32[1]{0}', space=sflag, size = 0x4, scoped, tag = 'scoped memory for fpn2mlp_forward.1']
    #allocation10 [shape = 'u8[512]{0}', space=vmem, size = 0x400, scoped, tag = 'input window, operand 4, single buffered']
    #allocation11 [shape = 'u8[65536]{0}', space=vmem, size = 0x10000, scoped, tag = 'output window, operand 0, single buffered']
    %10 = vsyncpa [#allocation3], 0
    %11 = vsyncpa [#allocation6], 0
    %12 = vsyncpa [#allocation9], 0
    %13 = vsyncpa [#allocation4], 0
    // Predicated region
    $region2: #{fpn2mlp_forward.1} parent=1 // pred_check
      _
    $region3: #{fpn2mlp_forward.1} parent=1 // pred_check_branch
      %15 = sbr.rel (0) target = $region5
    $region4: #{fpn2mlp_forward.1} parent=1 // pred_region
      %s17 = ssub.s32 1024, 64
      %18 = vsyncadd [#allocation3], %s17
      %s19 = sshll.u32 [#allocation2], 4
      %s20 = int_to_ptr.vmem [resolvable:$true] %s19
      %25 = dma.hbm_to_vmem [thread:$0]  %s0, 64, %s20, [#allocation3], 64, 64, 4
    $region5: #{fpn2mlp_forward.1} parent=1 // pred_fallthru
      _
    // Predicated region
    $region6: #{fpn2mlp_forward.1} parent=1 // pred_check
      _
    $region7: #{fpn2mlp_forward.1} parent=1 // pred_check_branch
      %27 = sbr.rel (0) target = $region9
    $region8: #{fpn2mlp_forward.1} parent=1 // pred_region
      %s29 = ssub.s32 512, 512
      %30 = vsyncadd [#allocation6], %s29
      %s31 = sshll.u32 [#allocation5], 4
      %s32 = int_to_ptr.vmem [resolvable:$true] %s31
      %37 = dma.hbm_to_vmem [thread:$0]  %s1, 512, %s32, [#allocation6], 64, 64, 4
    $region9: #{fpn2mlp_forward.1} parent=1 // pred_fallthru
      _
    // Predicated region
    $region10: #{fpn2mlp_forward.1} parent=1 // pred_check
      _
    $region11: #{fpn2mlp_forward.1} parent=1 // pred_check_branch
      %39 = sbr.rel (0) target = $region13
    $region12: #{fpn2mlp_forward.1} parent=1 // pred_region
      %s41 = ssub.s32 16, 16
      %42 = vsyncadd [#allocation6], %s41
      %s44 = sshll.u32 [#allocation7], 4
      %s45 = int_to_ptr.vmem [resolvable:$true] %s44
      %47 = dma.hbm_to_vmem [thread:$0]  %s2, 16, %s45, [#allocation6]
    $region13: #{fpn2mlp_forward.1} parent=1 // pred_fallthru
      _
    // Predicated region
    $region14: #{fpn2mlp_forward.1} parent=1 // pred_check
      _
    $region15: #{fpn2mlp_forward.1} parent=1 // pred_check_branch
      %49 = sbr.rel (0) target = $region17
    $region16: #{fpn2mlp_forward.1} parent=1 // pred_region
      %s51 = ssub.s32 1024, 1024
      %52 = vsyncadd [#allocation9], %s51
      %s53 = sshll.u32 [#allocation8], 4
      %s54 = int_to_ptr.vmem [resolvable:$true] %s53
      %59 = dma.hbm_to_vmem [thread:$0]  %s3, 1024, %s54, [#allocation9], 64, 64, 4
    $region17: #{fpn2mlp_forward.1} parent=1 // pred_fallthru
      _
    // Predicated region
    $region18: #{fpn2mlp_forward.1} parent=1 // pred_check
      _
    $region19: #{fpn2mlp_forward.1} parent=1 // pred_check_branch
      %61 = sbr.rel (0) target = $region21
    $region20: #{fpn2mlp_forward.1} parent=1 // pred_region
      %s63 = ssub.s32 16, 16
      %64 = vsyncadd [#allocation9], %s63
      %s66 = sshll.u32 [#allocation10], 4
      %s67 = int_to_ptr.vmem [resolvable:$true] %s66
      %69 = dma.hbm_to_vmem [thread:$0]  %s4, 16, %s67, [#allocation9]
    $region21: #{fpn2mlp_forward.1} parent=1 // pred_fallthru
      _
    // Predicated region
    $region22: #{fpn2mlp_forward.1} parent=1 // pred_check
      _
    $region23: #{fpn2mlp_forward.1} parent=1 // pred_check_branch
      %71 = sbr.rel (0) target = $region25
    $region24: #{fpn2mlp_forward.1} parent=1 // pred_region
      %72 = dma.done [#allocation3], 1024
    $region25: #{fpn2mlp_forward.1} parent=1 // pred_fallthru
      _
    // Predicated region
    $region26: #{fpn2mlp_forward.1} parent=1 // pred_check
      _
    $region27: #{fpn2mlp_forward.1} parent=1 // pred_check_branch
      %74 = sbr.rel (0) target = $region29
    $region28: #{fpn2mlp_forward.1} parent=1 // pred_region
      %75 = dma.done [#allocation6], 512
    $region29: #{fpn2mlp_forward.1} parent=1 // pred_fallthru
      _
    // Predicated region
    $region30: #{fpn2mlp_forward.1} parent=1 // pred_check
      _
    $region31: #{fpn2mlp_forward.1} parent=1 // pred_check_branch
      %77 = sbr.rel (0) target = $region33
    $region32: #{fpn2mlp_forward.1} parent=1 // pred_region
      %78 = dma.done [#allocation6], 16
    $region33: #{fpn2mlp_forward.1} parent=1 // pred_fallthru
      _
    // Predicated region
    $region34: #{fpn2mlp_forward.1} parent=1 // pred_check
      _
    $region35: #{fpn2mlp_forward.1} parent=1 // pred_check_branch
      %80 = sbr.rel (0) target = $region37
    $region36: #{fpn2mlp_forward.1} parent=1 // pred_region
      %81 = dma.done [#allocation9], 1024
    $region37: #{fpn2mlp_forward.1} parent=1 // pred_fallthru
      _
    // Predicated region
    $region38: #{fpn2mlp_forward.1} parent=1 // pred_check
      _
    $region39: #{fpn2mlp_forward.1} parent=1 // pred_check_branch
      %83 = sbr.rel (0) target = $region41
    $region40: #{fpn2mlp_forward.1} parent=1 // pred_region
      %84 = dma.done [#allocation9], 16
    $region41: #{fpn2mlp_forward.1} parent=1 // pred_fallthru
      _
    %p86 = scmp.eq.s32.totalorder 0, 0
    // Predicated region
    $region42: #{fpn2mlp_forward.1} parent=1 // pred_check
      %p87 = pneg %p86
    $region43: #{fpn2mlp_forward.1} parent=1 // pred_check_branch
      %89 = sbr.rel (%p87) target = $region45
    $region44: #{fpn2mlp_forward.1} parent=1 // pred_region
      %90 = vst [vmem:[#allocation11] sm:$0xff] 0.0
      %91 = vst [vmem:[#allocation11 + $0x8] sm:$0xff] 0.0
      %92 = vst [vmem:[#allocation11 + $0x10] sm:$0xff] 0.0
      %93 = vst [vmem:[#allocation11 + $0x18] sm:$0xff] 0.0
      %94 = vst [vmem:[#allocation11 + $0x20] sm:$0xff] 0.0
      %95 = vst [vmem:[#allocation11 + $0x28] sm:$0xff] 0.0
      %96 = vst [vmem:[#allocation11 + $0x30] sm:$0xff] 0.0
      %97 = vst [vmem:[#allocation11 + $0x38] sm:$0xff] 0.0
      %98 = vst [vmem:[#allocation11 + $0x40] sm:$0xff] 0.0
      %99 = vst [vmem:[#allocation11 + $0x48] sm:$0xff] 0.0
      %100 = vst [vmem:[#allocation11 + $0x50] sm:$0xff] 0.0
      %101 = vst [vmem:[#allocation11 + $0x58] sm:$0xff] 0.0
      %102 = vst [vmem:[#allocation11 + $0x60] sm:$0xff] 0.0
      %103 = vst [vmem:[#allocation11 + $0x68] sm:$0xff] 0.0
      %104 = vst [vmem:[#allocation11 + $0x70] sm:$0xff] 0.0
      %105 = vst [vmem:[#allocation11 + $0x78] sm:$0xff] 0.0
    $region45: #{fpn2mlp_forward.1} parent=1 // pred_fallthru
      _
    %v106 = vld [vmem:[#allocation2] sm:$0xf]
    %v107 = vld [vmem:[#allocation2 + $0x4] sm:$0xf]
    %v108 = vld [vmem:[#allocation2 + $0x8] sm:$0xf]
    %v109 = vld [vmem:[#allocation2 + $0xc] sm:$0xf]
    %v110 = vld [vmem:[#allocation2 + $0x10] sm:$0xf]
    %v111 = vld [vmem:[#allocation2 + $0x14] sm:$0xf]
    %v112 = vld [vmem:[#allocation2 + $0x18] sm:$0xf]
    %v113 = vld [vmem:[#allocation2 + $0x1c] sm:$0xf]
    %v114 = vld [vmem:[#allocation2 + $0x20] sm:$0xf]
    %v115 = vld [vmem:[#allocation2 + $0x24] sm:$0xf]
    %v116 = vld [vmem:[#allocation2 + $0x28] sm:$0xf]
    %v117 = vld [vmem:[#allocation2 + $0x2c] sm:$0xf]
    %v118 = vld [vmem:[#allocation2 + $0x30] sm:$0xf]
    %v119 = vld [vmem:[#allocation2 + $0x34] sm:$0xf]
    %v120 = vld [vmem:[#allocation2 + $0x38] sm:$0xf]
    %v121 = vld [vmem:[#allocation2 + $0x3c] sm:$0xf]
    %v122 = vld [vmem:[#allocation5] sm:$0xf]
    %v123 = vld [vmem:[#allocation5 + $0x4] sm:$0xf]
    %v124 = vld [vmem:[#allocation5 + $0x8] sm:$0xf]
    %v125 = vld [vmem:[#allocation5 + $0xc] sm:$0xf]
    %v126 = vld [vmem:[#allocation5 + $0x10] sm:$0xf]
    %v127 = vld [vmem:[#allocation5 + $0x14] sm:$0xf]
    %v128 = vld [vmem:[#allocation5 + $0x18] sm:$0xf]
    %v129 = vld [vmem:[#allocation5 + $0x1c] sm:$0xf]
    %v130 = vld [vmem:[#allocation11] sm:$0xff]
    %v131 = vld [vmem:[#allocation11 + $0x8] sm:$0xff]
    %v132 = vld [vmem:[#allocation11 + $0x10] sm:$0xff]
    %v133 = vld [vmem:[#allocation11 + $0x18] sm:$0xff]
    %v134 = vld [vmem:[#allocation11 + $0x20] sm:$0xff]
    %v135 = vld [vmem:[#allocation11 + $0x28] sm:$0xff]
    %v136 = vld [vmem:[#allocation11 + $0x30] sm:$0xff]
    %v137 = vld [vmem:[#allocation11 + $0x38] sm:$0xff]
    %v138 = vld [vmem:[#allocation11 + $0x40] sm:$0xff]
    %v139 = vld [vmem:[#allocation11 + $0x48] sm:$0xff]
    %v140 = vld [vmem:[#allocation11 + $0x50] sm:$0xff]
    %v141 = vld [vmem:[#allocation11 + $0x58] sm:$0xff]
    %v142 = vld [vmem:[#allocation11 + $0x60] sm:$0xff]
    %v143 = vld [vmem:[#allocation11 + $0x68] sm:$0xff]
    %v144 = vld [vmem:[#allocation11 + $0x70] sm:$0xff]
    %v145 = vld [vmem:[#allocation11 + $0x78] sm:$0xff]
    %v162 = vunpack.c.l.b16 %v106
    %v163 = vunpack.c.l.b16 %v107
    %v164 = vunpack.c.l.b16 %v108
    %v165 = vunpack.c.l.b16 %v109
    %v166 = vunpack.c.l.b16 %v110
    %v167 = vunpack.c.l.b16 %v111
    %v168 = vunpack.c.l.b16 %v112
    %v169 = vunpack.c.l.b16 %v113
    %v170 = vunpack.c.l.b16 %v114
    %v171 = vunpack.c.l.b16 %v115
    %v172 = vunpack.c.l.b16 %v116
    %v173 = vunpack.c.l.b16 %v117
    %v174 = vunpack.c.l.b16 %v118
    %v175 = vunpack.c.l.b16 %v119
    %v176 = vunpack.c.l.b16 %v120
    %v177 = vunpack.c.l.b16 %v121
    %v178 = vpack.c.b16 %v163, %v162
    %v179 = vpack.c.b16 %v165, %v164
    %v180 = vpack.c.b16 %v167, %v166
    %v181 = vpack.c.b16 %v169, %v168
    %v182 = vpack.c.b16 %v171, %v170
    %v183 = vpack.c.b16 %v173, %v172
    %v184 = vpack.c.b16 %v175, %v174
    %v185 = vpack.c.b16 %v177, %v176
    %v194 = vunpack.c.l.b16 %v122
    %v195 = vunpack.c.l.b16 %v123
    %v196 = vunpack.c.l.b16 %v124
    %v197 = vunpack.c.l.b16 %v125
    %v198 = vunpack.c.l.b16 %v126
    %v199 = vunpack.c.l.b16 %v127
    %v200 = vunpack.c.l.b16 %v128
    %v201 = vunpack.c.l.b16 %v129
    %v202 = vpack.c.b16 %v195, %v194
    %v203 = vpack.c.b16 %v197, %v196
    %v204 = vpack.c.b16 %v199, %v198
    %v205 = vpack.c.b16 %v201, %v200
    %vm210 = vcmask 523264
    %v212 = vsel %vm210, %v178, 0
    %v215 = vsel %vm210, %v179, 0
    %v218 = vsel %vm210, %v180, 0
    %v221 = vsel %vm210, %v181, 0
    %v224 = vsel %vm210, %v182, 0
    %v227 = vsel %vm210, %v183, 0
    %v230 = vsel %vm210, %v184, 0
    %v233 = vsel %vm210, %v185, 0
    %235 = vmatprep.subr.bf16.mxu0 0
    %236 = vmatpush1.bf16.msra.mxu0 %v202
    %237 = vmatprep.subr.bf16.mxu0 0
    %238 = vmatpush1.bf16.msra.mxu0 %v203
    %239 = vmatprep.subr.bf16.mxu0 0
    %240 = vmatpush1.bf16.msra.mxu0 %v204
    %241 = vmatprep.subr.bf16.mxu0 0
    %242 = vmatpush1.bf16.msra.mxu0 %v205
    %243 = vmatprep.subr.bf16.mxu0 0
    %244 = vmatpush1.bf16.msra.mxu0 0
    %245 = vmatprep.subr.bf16.mxu0 0
    %246 = vmatpush1.bf16.msra.mxu0 0
    %247 = vmatprep.subr.bf16.mxu0 0
    %248 = vmatpush1.bf16.msra.mxu0 0
    %249 = vmatprep.subr.bf16.mxu0 0
    %250 = vmatpush1.bf16.msra.mxu0 0
    %251 = vmatprep.subr.bf16.mxu0 0
    %252 = vmatpush1.bf16.msra.mxu0 0
    %253 = vmatprep.subr.bf16.mxu0 0
    %254 = vmatpush1.bf16.msra.mxu0 0
    %255 = vmatprep.subr.bf16.mxu0 0
    %256 = vmatpush1.bf16.msra.mxu0 0
    %257 = vmatprep.subr.bf16.mxu0 0
    %258 = vmatpush1.bf16.msra.mxu0 0
    %259 = vmatprep.subr.bf16.mxu0 0
    %260 = vmatpush1.bf16.msra.mxu0 0
    %261 = vmatprep.subr.bf16.mxu0 0
    %262 = vmatpush1.bf16.msra.mxu0 0
    %263 = vmatprep.subr.bf16.mxu0 0
    %264 = vmatpush1.bf16.msra.mxu0 0
    %265 = vmatprep.subr.bf16.mxu0 0
    %266 = vmatpush1.bf16.msra.mxu0 0
    %267 = vmatprep.mubr.bf16.mxu0 0
    %268 = vmatmul.mubr.bf16.gmra.mrb[0].mxu0 %v212
    %v269 = vpop.f32.mrb[0].mxu0
    %v270 = vadd.f32 0.0, %v269
    %v271 = vpop.f32.mrb[0].mxu0
    %v272 = vpop.f32.mrb[0].mxu0
    %v273 = vadd.f32 0.0, %v272
    %v274 = vpop.f32.mrb[0].mxu0
    %275 = vmatprep.mubr.bf16.mxu0 0
    %276 = vmatmul.mubr.bf16.gmra.mrb[0].mxu0 %v215
    %v277 = vpop.f32.mrb[0].mxu0
    %v278 = vadd.f32 0.0, %v277
    %v279 = vpop.f32.mrb[0].mxu0
    %v280 = vpop.f32.mrb[0].mxu0
    %v281 = vadd.f32 0.0, %v280
    %v282 = vpop.f32.mrb[0].mxu0
    %283 = vmatprep.mubr.bf16.mxu0 0
    %284 = vmatmul.mubr.bf16.gmra.mrb[0].mxu0 %v218
    %v285 = vpop.f32.mrb[0].mxu0
    %v286 = vadd.f32 0.0, %v285
    %v287 = vpop.f32.mrb[0].mxu0
    %v288 = vpop.f32.mrb[0].mxu0
    %v289 = vadd.f32 0.0, %v288
    %v290 = vpop.f32.mrb[0].mxu0
    %291 = vmatprep.mubr.bf16.mxu0 0
    %292 = vmatmul.mubr.bf16.gmra.mrb[0].mxu0 %v221
    %v293 = vpop.f32.mrb[0].mxu0
    %v294 = vadd.f32 0.0, %v293
    %v295 = vpop.f32.mrb[0].mxu0
    %v296 = vpop.f32.mrb[0].mxu0
    %v297 = vadd.f32 0.0, %v296
    %v298 = vpop.f32.mrb[0].mxu0
    %299 = vmatprep.mubr.bf16.mxu0 0
    %300 = vmatmul.mubr.bf16.gmra.mrb[0].mxu0 %v224
    %v301 = vpop.f32.mrb[0].mxu0
    %v302 = vadd.f32 0.0, %v301
    %v303 = vpop.f32.mrb[0].mxu0
    %v304 = vpop.f32.mrb[0].mxu0
    %v305 = vadd.f32 0.0, %v304
    %v306 = vpop.f32.mrb[0].mxu0
    %307 = vmatprep.mubr.bf16.mxu0 0
    %308 = vmatmul.mubr.bf16.gmra.mrb[0].mxu0 %v227
    %v309 = vpop.f32.mrb[0].mxu0
    %v310 = vadd.f32 0.0, %v309
    %v311 = vpop.f32.mrb[0].mxu0
    %v312 = vpop.f32.mrb[0].mxu0
    %v313 = vadd.f32 0.0, %v312
    %v314 = vpop.f32.mrb[0].mxu0
    %315 = vmatprep.mubr.bf16.mxu0 0
    %316 = vmatmul.mubr.bf16.gmra.mrb[0].mxu0 %v230
    %v317 = vpop.f32.mrb[0].mxu0
    %v318 = vadd.f32 0.0, %v317
    %v319 = vpop.f32.mrb[0].mxu0
    %v320 = vpop.f32.mrb[0].mxu0
    %v321 = vadd.f32 0.0, %v320
    %v322 = vpop.f32.mrb[0].mxu0
    %323 = vmatprep.mubr.bf16.mxu0 0
    %324 = vmatmul.mubr.bf16.gmra.mrb[0].mxu0 %v233
    %v325 = vpop.f32.mrb[0].mxu0
    %v326 = vadd.f32 0.0, %v325
    %v327 = vpop.f32.mrb[0].mxu0
    %v328 = vpop.f32.mrb[0].mxu0
    %v329 = vadd.f32 0.0, %v328
    %v330 = vpop.f32.mrb[0].mxu0
    %331 = vdwg.mxu0
    %v332 = vadd.f32 %v130, %v270
    %v333 = vadd.f32 %v131, %v273
    %v334 = vadd.f32 %v132, %v278
    %v335 = vadd.f32 %v133, %v281
    %v336 = vadd.f32 %v134, %v286
    %v337 = vadd.f32 %v135, %v289
    %v338 = vadd.f32 %v136, %v294
    %v339 = vadd.f32 %v137, %v297
    %v340 = vadd.f32 %v138, %v302
    %v341 = vadd.f32 %v139, %v305
    %v342 = vadd.f32 %v140, %v310
    %v343 = vadd.f32 %v141, %v313
    %v344 = vadd.f32 %v142, %v318
    %v345 = vadd.f32 %v143, %v321
    %v346 = vadd.f32 %v144, %v326
    %v347 = vadd.f32 %v145, %v329
    %348 = vst [vmem:[#allocation11] sm:$0xff] %v332
    %349 = vst [vmem:[#allocation11 + $0x8] sm:$0xff] %v333
    %350 = vst [vmem:[#allocation11 + $0x10] sm:$0xff] %v334
    %351 = vst [vmem:[#allocation11 + $0x18] sm:$0xff] %v335
    %352 = vst [vmem:[#allocation11 + $0x20] sm:$0xff] %v336
    %353 = vst [vmem:[#allocation11 + $0x28] sm:$0xff] %v337
    %354 = vst [vmem:[#allocation11 + $0x30] sm:$0xff] %v338
    %355 = vst [vmem:[#allocation11 + $0x38] sm:$0xff] %v339
    %356 = vst [vmem:[#allocation11 + $0x40] sm:$0xff] %v340
    %357 = vst [vmem:[#allocation11 + $0x48] sm:$0xff] %v341
    %358 = vst [vmem:[#allocation11 + $0x50] sm:$0xff] %v342
    %359 = vst [vmem:[#allocation11 + $0x58] sm:$0xff] %v343
    %360 = vst [vmem:[#allocation11 + $0x60] sm:$0xff] %v344
    %361 = vst [vmem:[#allocation11 + $0x68] sm:$0xff] %v345
    %362 = vst [vmem:[#allocation11 + $0x70] sm:$0xff] %v346
    %363 = vst [vmem:[#allocation11 + $0x78] sm:$0xff] %v347
    // Predicated region
    $region46: #{fpn2mlp_forward.1} parent=1 // pred_check
      %p364 = pneg %p86
    $region47: #{fpn2mlp_forward.1} parent=1 // pred_check_branch
      %366 = sbr.rel (%p364) target = $region49
    $region48: #{fpn2mlp_forward.1} parent=1 // pred_region
      %v367 = vld [vmem:[#allocation11] sm:$0xff]
      %v368 = vld [vmem:[#allocation11 + $0x8] sm:$0xff]
      %v369 = vld [vmem:[#allocation11 + $0x10] sm:$0xff]
      %v370 = vld [vmem:[#allocation11 + $0x18] sm:$0xff]
      %v371 = vld [vmem:[#allocation11 + $0x20] sm:$0xff]
      %v372 = vld [vmem:[#allocation11 + $0x28] sm:$0xff]
      %v373 = vld [vmem:[#allocation11 + $0x30] sm:$0xff]
      %v374 = vld [vmem:[#allocation11 + $0x38] sm:$0xff]
      %v375 = vld [vmem:[#allocation11 + $0x40] sm:$0xff]
      %v376 = vld [vmem:[#allocation11 + $0x48] sm:$0xff]
      %v377 = vld [vmem:[#allocation11 + $0x50] sm:$0xff]
      %v378 = vld [vmem:[#allocation11 + $0x58] sm:$0xff]
      %v379 = vld [vmem:[#allocation11 + $0x60] sm:$0xff]
      %v380 = vld [vmem:[#allocation11 + $0x68] sm:$0xff]
      %v381 = vld [vmem:[#allocation11 + $0x70] sm:$0xff]
      %v382 = vld [vmem:[#allocation11 + $0x78] sm:$0xff]
      %v383 = vld [vmem:[#allocation7] sm:$0x1]
      %v385 = vlaneseq
      %v386 = vshrl.u32 %v385, 7
      %v387 = vsub.s32 0, %v386
      %v388 = vrot.slane %v383, %v387
      %v390 = vadd.f32 %v367, %v388
      %v391 = vadd.f32 %v368, %v388
      %v392 = vadd.f32 %v369, %v388
      %v393 = vadd.f32 %v370, %v388
      %v394 = vadd.f32 %v371, %v388
      %v395 = vadd.f32 %v372, %v388
      %v396 = vadd.f32 %v373, %v388
      %v397 = vadd.f32 %v374, %v388
      %v398 = vadd.f32 %v375, %v388
      %v399 = vadd.f32 %v376, %v388
      %v400 = vadd.f32 %v377, %v388
      %v401 = vadd.f32 %v378, %v388
      %v402 = vadd.f32 %v379, %v388
      %v403 = vadd.f32 %v380, %v388
      %v404 = vadd.f32 %v381, %v388
      %v405 = vadd.f32 %v382, %v388
      %v406 = vmax.f32 %v390, 0.0
      %v407 = vmax.f32 %v391, 0.0
      %v408 = vmax.f32 %v392, 0.0
      %v409 = vmax.f32 %v393, 0.0
      %v410 = vmax.f32 %v394, 0.0
      %v411 = vmax.f32 %v395, 0.0
      %v412 = vmax.f32 %v396, 0.0
      %v413 = vmax.f32 %v397, 0.0
      %v414 = vmax.f32 %v398, 0.0
      %v415 = vmax.f32 %v399, 0.0
      %v416 = vmax.f32 %v400, 0.0
      %v417 = vmax.f32 %v401, 0.0
      %v418 = vmax.f32 %v402, 0.0
      %v419 = vmax.f32 %v403, 0.0
      %v420 = vmax.f32 %v404, 0.0
      %v421 = vmax.f32 %v405, 0.0
      %v422 = vpack.c.bf16 %v407, %v406
      %v423 = vpack.c.bf16 %v409, %v408
      %v424 = vpack.c.bf16 %v411, %v410
      %v425 = vpack.c.bf16 %v413, %v412
      %v426 = vpack.c.bf16 %v415, %v414
      %v427 = vpack.c.bf16 %v417, %v416
      %v428 = vpack.c.bf16 %v419, %v418
      %v429 = vpack.c.bf16 %v421, %v420
      %v430 = vld [vmem:[#allocation8] sm:$0xf]
      %v431 = vld [vmem:[#allocation8 + $0x4] sm:$0xf]
      %v432 = vld [vmem:[#allocation8 + $0x8] sm:$0xf]
      %v433 = vld [vmem:[#allocation8 + $0xc] sm:$0xf]
      %v434 = vld [vmem:[#allocation8 + $0x10] sm:$0xf]
      %v435 = vld [vmem:[#allocation8 + $0x14] sm:$0xf]
      %v436 = vld [vmem:[#allocation8 + $0x18] sm:$0xf]
      %v437 = vld [vmem:[#allocation8 + $0x1c] sm:$0xf]
      %v438 = vld [vmem:[#allocation8 + $0x20] sm:$0xf]
      %v439 = vld [vmem:[#allocation8 + $0x24] sm:$0xf]
      %v440 = vld [vmem:[#allocation8 + $0x28] sm:$0xf]
      %v441 = vld [vmem:[#allocation8 + $0x2c] sm:$0xf]
      %v442 = vld [vmem:[#allocation8 + $0x30] sm:$0xf]
      %v443 = vld [vmem:[#allocation8 + $0x34] sm:$0xf]
      %v444 = vld [vmem:[#allocation8 + $0x38] sm:$0xf]
      %v445 = vld [vmem:[#allocation8 + $0x3c] sm:$0xf]
      %v446 = vld [vmem:[#allocation10] sm:$0x1]
      %v448 = vlaneseq
      %v449 = vshrl.u32 %v448, 7
      %v450 = vsub.s32 0, %v449
      %v451 = vrot.slane %v446, %v450
      %v469 = vunpack.c.l.b16 %v430
      %v470 = vunpack.c.l.b16 %v431
      %v471 = vunpack.c.l.b16 %v432
      %v472 = vunpack.c.l.b16 %v433
      %v473 = vunpack.c.l.b16 %v434
      %v474 = vunpack.c.l.b16 %v435
      %v475 = vunpack.c.l.b16 %v436
      %v476 = vunpack.c.l.b16 %v437
      %v477 = vunpack.c.l.b16 %v438
      %v478 = vunpack.c.l.b16 %v439
      %v479 = vunpack.c.l.b16 %v440
      %v480 = vunpack.c.l.b16 %v441
      %v481 = vunpack.c.l.b16 %v442
      %v482 = vunpack.c.l.b16 %v443
      %v483 = vunpack.c.l.b16 %v444
      %v484 = vunpack.c.l.b16 %v445
      %v485 = vpack.c.b16 %v470, %v469
      %v486 = vpack.c.b16 %v472, %v471
      %v487 = vpack.c.b16 %v474, %v473
      %v488 = vpack.c.b16 %v476, %v475
      %v489 = vpack.c.b16 %v478, %v477
      %v490 = vpack.c.b16 %v480, %v479
      %v491 = vpack.c.b16 %v482, %v481
      %v492 = vpack.c.b16 %v484, %v483
      %501 = vmatprep.subr.bf16.mxu0 0
      %502 = vmatpush1.bf16.msra.mxu0 %v485
      %503 = vmatprep.subr.bf16.mxu0 0
      %504 = vmatpush1.bf16.msra.mxu0 %v486
      %505 = vmatprep.subr.bf16.mxu0 0
      %506 = vmatpush1.bf16.msra.mxu0 %v487
      %507 = vmatprep.subr.bf16.mxu0 0
      %508 = vmatpush1.bf16.msra.mxu0 %v488
      %509 = vmatprep.subr.bf16.mxu0 0
      %510 = vmatpush1.bf16.msra.mxu0 %v489
      %511 = vmatprep.subr.bf16.mxu0 0
      %512 = vmatpush1.bf16.msra.mxu0 %v490
      %513 = vmatprep.subr.bf16.mxu0 0
      %514 = vmatpush1.bf16.msra.mxu0 %v491
      %515 = vmatprep.subr.bf16.mxu0 0
      %516 = vmatpush1.bf16.msra.mxu0 %v492
      %517 = vmatprep.subr.bf16.mxu0 0
      %518 = vmatpush1.bf16.msra.mxu0 0
      %519 = vmatprep.subr.bf16.mxu0 0
      %520 = vmatpush1.bf16.msra.mxu0 0
      %521 = vmatprep.subr.bf16.mxu0 0
      %522 = vmatpush1.bf16.msra.mxu0 0
      %523 = vmatprep.subr.bf16.mxu0 0
      %524 = vmatpush1.bf16.msra.mxu0 0
      %525 = vmatprep.subr.bf16.mxu0 0
      %526 = vmatpush1.bf16.msra.mxu0 0
      %527 = vmatprep.subr.bf16.mxu0 0
      %528 = vmatpush1.bf16.msra.mxu0 0
      %529 = vmatprep.subr.bf16.mxu0 0
      %530 = vmatpush1.bf16.msra.mxu0 0
      %531 = vmatprep.subr.bf16.mxu0 0
      %532 = vmatpush1.bf16.msra.mxu0 0
      %533 = vmatprep.mubr.bf16.mxu0 0
      %534 = vmatmul.mubr.bf16.gmra.mrb[0].mxu0 %v422
      %v535 = vpop.f32.mrb[0].mxu0
      %v536 = vadd.f32 %v451, %v535
      %v537 = vpop.f32.mrb[0].mxu0
      %v538 = vpop.f32.mrb[0].mxu0
      %v539 = vadd.f32 %v451, %v538
      %v540 = vpop.f32.mrb[0].mxu0
      %541 = vmatprep.mubr.bf16.mxu0 0
      %542 = vmatmul.mubr.bf16.gmra.mrb[0].mxu0 %v423
      %v543 = vpop.f32.mrb[0].mxu0
      %v544 = vadd.f32 %v451, %v543
      %v545 = vpop.f32.mrb[0].mxu0
      %v546 = vpop.f32.mrb[0].mxu0
      %v547 = vadd.f32 %v451, %v546
      %v548 = vpop.f32.mrb[0].mxu0
      %549 = vmatprep.mubr.bf16.mxu0 0
      %550 = vmatmul.mubr.bf16.gmra.mrb[0].mxu0 %v424
      %v551 = vpop.f32.mrb[0].mxu0
      %v552 = vadd.f32 %v451, %v551
      %v553 = vpop.f32.mrb[0].mxu0
      %v554 = vpop.f32.mrb[0].mxu0
      %v555 = vadd.f32 %v451, %v554
      %v556 = vpop.f32.mrb[0].mxu0
      %557 = vmatprep.mubr.bf16.mxu0 0
      %558 = vmatmul.mubr.bf16.gmra.mrb[0].mxu0 %v425
      %v559 = vpop.f32.mrb[0].mxu0
      %v560 = vadd.f32 %v451, %v559
      %v561 = vpop.f32.mrb[0].mxu0
      %v562 = vpop.f32.mrb[0].mxu0
      %v563 = vadd.f32 %v451, %v562
      %v564 = vpop.f32.mrb[0].mxu0
      %565 = vmatprep.mubr.bf16.mxu0 0
      %566 = vmatmul.mubr.bf16.gmra.mrb[0].mxu0 %v426
      %v567 = vpop.f32.mrb[0].mxu0
      %v568 = vadd.f32 %v451, %v567
      %v569 = vpop.f32.mrb[0].mxu0
      %v570 = vpop.f32.mrb[0].mxu0
      %v571 = vadd.f32 %v451, %v570
      %v572 = vpop.f32.mrb[0].mxu0
      %573 = vmatprep.mubr.bf16.mxu0 0
      %574 = vmatmul.mubr.bf16.gmra.mrb[0].mxu0 %v427
      %v575 = vpop.f32.mrb[0].mxu0
      %v576 = vadd.f32 %v451, %v575
      %v577 = vpop.f32.mrb[0].mxu0
      %v578 = vpop.f32.mrb[0].mxu0
      %v579 = vadd.f32 %v451, %v578
      %v580 = vpop.f32.mrb[0].mxu0
      %581 = vmatprep.mubr.bf16.mxu0 0
      %582 = vmatmul.mubr.bf16.gmra.mrb[0].mxu0 %v428
      %v583 = vpop.f32.mrb[0].mxu0
      %v584 = vadd.f32 %v451, %v583
      %v585 = vpop.f32.mrb[0].mxu0
      %v586 = vpop.f32.mrb[0].mxu0
      %v587 = vadd.f32 %v451, %v586
      %v588 = vpop.f32.mrb[0].mxu0
      %589 = vmatprep.mubr.bf16.mxu0 0
      %590 = vmatmul.mubr.bf16.gmra.mrb[0].mxu0 %v429
      %v591 = vpop.f32.mrb[0].mxu0
      %v592 = vadd.f32 %v451, %v591
      %v593 = vpop.f32.mrb[0].mxu0
      %v594 = vpop.f32.mrb[0].mxu0
      %v595 = vadd.f32 %v451, %v594
      %v596 = vpop.f32.mrb[0].mxu0
      %597 = vdwg.mxu0
      %v598 = vmax.f32 %v536, 0.0
      %v599 = vmax.f32 %v539, 0.0
      %v600 = vmax.f32 %v544, 0.0
      %v601 = vmax.f32 %v547, 0.0
      %v602 = vmax.f32 %v552, 0.0
      %v603 = vmax.f32 %v555, 0.0
      %v604 = vmax.f32 %v560, 0.0
      %v605 = vmax.f32 %v563, 0.0
      %v606 = vmax.f32 %v568, 0.0
      %v607 = vmax.f32 %v571, 0.0
      %v608 = vmax.f32 %v576, 0.0
      %v609 = vmax.f32 %v579, 0.0
      %v610 = vmax.f32 %v584, 0.0
      %v611 = vmax.f32 %v587, 0.0
      %v612 = vmax.f32 %v592, 0.0
      %v613 = vmax.f32 %v595, 0.0
      %614 = vst [vmem:[#allocation11] sm:$0xff] %v598
      %615 = vst [vmem:[#allocation11 + $0x8] sm:$0xff] %v599
      %616 = vst [vmem:[#allocation11 + $0x10] sm:$0xff] %v600
      %617 = vst [vmem:[#allocation11 + $0x18] sm:$0xff] %v601
      %618 = vst [vmem:[#allocation11 + $0x20] sm:$0xff] %v602
      %619 = vst [vmem:[#allocation11 + $0x28] sm:$0xff] %v603
      %620 = vst [vmem:[#allocation11 + $0x30] sm:$0xff] %v604
      %621 = vst [vmem:[#allocation11 + $0x38] sm:$0xff] %v605
      %622 = vst [vmem:[#allocation11 + $0x40] sm:$0xff] %v606
      %623 = vst [vmem:[#allocation11 + $0x48] sm:$0xff] %v607
      %624 = vst [vmem:[#allocation11 + $0x50] sm:$0xff] %v608
      %625 = vst [vmem:[#allocation11 + $0x58] sm:$0xff] %v609
      %626 = vst [vmem:[#allocation11 + $0x60] sm:$0xff] %v610
      %627 = vst [vmem:[#allocation11 + $0x68] sm:$0xff] %v611
      %628 = vst [vmem:[#allocation11 + $0x70] sm:$0xff] %v612
      %629 = vst [vmem:[#allocation11 + $0x78] sm:$0xff] %v613
    $region49: #{fpn2mlp_forward.1} parent=1 // pred_fallthru
      _
    // Predicated region
    $region50: #{fpn2mlp_forward.1} parent=1 // pred_check
      _
    $region51: #{fpn2mlp_forward.1} parent=1 // pred_check_branch
      %631 = sbr.rel (0) target = $region53
    $region52: #{fpn2mlp_forward.1} parent=1 // pred_region
      %s633 = ssub.s32 2048, 128
      %634 = vsyncadd [#allocation4], %s633
      %s635 = sshll.u32 [#allocation11], 4
      %s636 = int_to_ptr.vmem [resolvable:$true] %s635
      %641 = dma.vmem_to_hbm [thread:$0]  %s636, 128, %s5, [#allocation4], 128, 128, 8
    $region53: #{fpn2mlp_forward.1} parent=1 // pred_fallthru
      _
    // Predicated region
    $region54: #{fpn2mlp_forward.1} parent=1 // pred_check
      _
    $region55: #{fpn2mlp_forward.1} parent=1 // pred_check_branch
      %643 = sbr.rel (0) target = $region57
    $region56: #{fpn2mlp_forward.1} parent=1 // pred_region
      %644 = dma.done [#allocation4], 2048
    $region57: #{fpn2mlp_forward.1} parent=1 // pred_fallthru
      _
    %645 = vsyncpa [#allocation3], 1
    %646 = vsyncpa [#allocation6], 1
    %647 = vsyncpa [#allocation9], 1
    %648 = vsyncpa [#allocation4], 1

</llo_original>
